<compile_context>
chip_gen: v5e
topology: v5e:2x2
jax: 0.10.0
libtpu: 0.0.40
codegen_flags: <defaults>
</compile_context>

<pallas_src>
import functools

import jax
import jax.numpy as jnp
import numpy as np
from jax.experimental import pallas as pl
from jax.experimental.pallas import tpu as pltpu

LEAKY_SLOPE = 0.2
IN_EPS = 1e-5


def _leaky(v):
    return jnp.where(v >= 0, v, LEAKY_SLOPE * v)


def _resblock_kernel(xpad_ref, w1_ref, w2_ref, ws_ref, bs_ref, out_ref, *,
                     dilation, valid_l, fuse_taps):
    # xpad_ref: (nb, C, Lpad + 2d) bf16          out_ref: (nb, C, Lpad) f32
    # w1_ref:   (C, 3C) bf16 if fuse_taps else (3, C, C) bf16
    # w2_ref / ws_ref: (C, C) bf16               bs_ref: (C, 1) f32
    d = dilation
    nb, C, Lpad = out_ref.shape

    bs = bs_ref[...]                                   # (C, 1) f32
    w2 = w2_ref[...]
    ws = ws_ref[...]
    if fuse_taps:
        w1f = w1_ref[...]                              # (C, 3C)
    else:
        w1k = [w1_ref[k] for k in range(3)]            # 3 x (C, C)

    if valid_l == Lpad:
        mask = None
    else:
        mask = (jax.lax.broadcasted_iota(jnp.int32, (1, Lpad), 1)
                < valid_l).astype(jnp.float32)
    inv_l = 1.0 / valid_l

    def _norm(v):
        # InstanceNorm1d(affine=False): biased var over L per channel, f32.
        # Single-pass stats: var = E[v^2] - m^2 (clamped for cancellation).
        if mask is None:
            s = jnp.sum(v, axis=-1, keepdims=True)
            sq = jnp.sum(v * v, axis=-1, keepdims=True)
        else:
            s = jnp.sum(v * mask, axis=-1, keepdims=True)
            sq = jnp.sum(v * v * mask, axis=-1, keepdims=True)
        m = s * inv_l
        var = jnp.maximum(sq * inv_l - m * m, 0.0)
        return (v - m) * jax.lax.rsqrt(var + IN_EPS)

    for i in range(nb):                                # nb is small & static
        xp = xpad_ref[i]                               # (C, Lpad + 2d) bf16
        x_bf = xp[:, d:d + Lpad]                       # interior == bf16(x)

        # LeakyReLU commutes with reflect padding -> apply once on the slab.
        h = _leaky(xp)                                 # bf16

        if fuse_taps:
            # Fused 3-tap dilated conv: one bf16 MXU matmul, 3C contraction.
            stacked = jnp.concatenate(
                [h[:, k * d:k * d + Lpad] for k in range(3)], axis=0)
            acc = jnp.dot(w1f, stacked, preferred_element_type=jnp.float32)
        else:
            # Small C: skip the (3C, L) concat temp, accumulate three dots.
            acc = jnp.dot(w1k[0], h[:, 0:Lpad],
                          preferred_element_type=jnp.float32)
            acc = acc + jnp.dot(w1k[1], h[:, d:d + Lpad],
                                preferred_element_type=jnp.float32)
            acc = acc + jnp.dot(w1k[2], h[:, 2 * d:2 * d + Lpad],
                                preferred_element_type=jnp.float32)
        # (conv1 bias b1 dropped: cancelled exactly by the InstanceNorm below)

        h2 = _leaky(_norm(acc)).astype(jnp.bfloat16)
        h3 = jnp.dot(w2, h2, preferred_element_type=jnp.float32)
        # (conv2 bias b2 dropped: cancelled by the second InstanceNorm)
        blk = _norm(h3)

        # shortcut: Conv1d(k=1) on raw x
        sc = jnp.dot(ws, x_bf, preferred_element_type=jnp.float32) + bs

        out_ref[i] = (blk + sc).astype(out_ref.dtype)


def transform_resnet_block(x, params, *, dilation=1):
    """x: (N, C, L) float32. params: dict of weights (see init_params)."""
    N, C, L = x.shape
    d = dilation

    Lpad = ((L + 127) // 128) * 128       # lane-dense output width
    Lp = Lpad + 2 * d

    # reflect-pad the length axis (host glue); the kernel recovers x from the
    # interior.  Extra zero columns (if any) only affect positions >= L, which
    # are masked out of the norm statistics and sliced off at the end.
    xpad = jnp.pad(x, ((0, 0), (0, 0), (d, d)), mode="reflect")
    if Lpad != L:
        xpad = jnp.pad(xpad, ((0, 0), (0, 0), (0, Lpad - L)))
    xpad = xpad.astype(jnp.bfloat16)      # bf16 HBM stream (dominant input)

    fuse_taps = C >= 128
    if fuse_taps:
        # (C, C, 3) -> (C, 3, C) -> (C, 3C): column j = k*C + c holds
        # w1[o, c, k], matching the tap-major stacked RHS built in-kernel.
        w1k = jnp.transpose(params["w1"], (0, 2, 1)).reshape(C, 3 * C)
        w1k = w1k.astype(jnp.bfloat16)
        w1_spec = pl.BlockSpec((C, 3 * C), lambda n: (0, 0))
    else:
        # (3, C, C): w1k[k] == w1[:, :, k]
        w1k = jnp.transpose(params["w1"], (2, 0, 1)).astype(jnp.bfloat16)
        w1_spec = pl.BlockSpec((3, C, C), lambda n: (0, 0, 0))

    w2 = params["w2"][:, :, 0].astype(jnp.bfloat16)
    ws = params["ws"][:, :, 0].astype(jnp.bfloat16)
    bs = params["bs"].reshape(C, 1).astype(jnp.float32)

    # Batch nb samples per grid step when per-batch slabs are tiny, to
    # amortize per-step overhead and keep the DMA pipeline fed.
    per_batch = 2 * C * Lp + 10 * 4 * C * Lpad          # bf16 slab + f32 temps
    nb = 1
    for cand in range(1, min(N, 8) + 1):
        if N % cand == 0 and cand * per_batch <= 4 * 1024 * 1024:
            nb = cand
    grid_n = N // nb

    kernel = functools.partial(_resblock_kernel, dilation=d, valid_l=L,
                               fuse_taps=fuse_taps)

    # 3 matmuls per batch element: C x 3C x L, C x C x L, C x C x L.
    flops = 2 * N * Lpad * (5 * C * C)
    bytes_accessed = 2 * N * C * Lp + 4 * N * C * Lpad + 2 * (5 * C * C) + 4 * C
    cost = pl.CostEstimate(flops=flops, transcendentals=2 * N * C,
                           bytes_accessed=bytes_accessed)

    # VMEM budget: double-buffered in/out slabs + live temps + weights,
    # clamped with headroom (~75%) under the physical per-core capacity
    # (128 MiB on v5e/v6e, 64 MiB on v7x).
    try:
        cap = int(pltpu.get_tpu_info().vmem_capacity_bytes)
    except Exception:  # not on TPU / API drift: assume the 128 MiB parts
        cap = 128 * 1024 * 1024
    slab = (2 * nb * (2 * C * Lp + 4 * C * Lpad)       # double-buffered I/O
            + nb * 12 * 4 * C * Lpad                   # live full-width temps
            + 4 * 5 * C * C + 4 * C)                   # weights + bias
    vmem_limit = int(min(int(0.75 * cap), max(32 * 1024 * 1024, 2 * slab)))

    out = pl.pallas_call(
        kernel,
        out_shape=jax.ShapeDtypeStruct((N, C, Lpad), x.dtype),
        grid=(grid_n,),
        in_specs=[
            pl.BlockSpec((nb, C, Lp), lambda n: (n, 0, 0)),   # padded input
            w1_spec,                                          # conv1 weight
            pl.BlockSpec((C, C), lambda n: (0, 0)),           # conv2 weight
            pl.BlockSpec((C, C), lambda n: (0, 0)),           # shortcut weight
            pl.BlockSpec((C, 1), lambda n: (0, 0)),           # shortcut bias
        ],
        out_specs=pl.BlockSpec((nb, C, Lpad), lambda n: (n, 0, 0)),
        compiler_params=pltpu.CompilerParams(
            dimension_semantics=("parallel",),
            vmem_limit_bytes=vmem_limit),
        cost_estimate=cost,
    )(xpad, w1k, w2, ws, bs)

    if Lpad != L:
        out = out[:, :, :L]
    return out


def init_params(key, n_channel, kernel_size=3):
    """Deterministic synthetic parameters matching nn.Conv1d shapes."""
    ks = jax.random.split(key, 6)
    C = n_channel
    scale3 = 1.0 / np.sqrt(C * kernel_size)
    scale1 = 1.0 / np.sqrt(C)
    return {
        "w1": jax.random.uniform(ks[0], (C, C, kernel_size), jnp.float32,
                                 -scale3, scale3),
        "b1": jax.random.uniform(ks[1], (C,), jnp.float32, -scale3, scale3),
        "w2": jax.random.uniform(ks[2], (C, C, 1), jnp.float32, -scale1, scale1),
        "b2": jax.random.uniform(ks[3], (C,), jnp.float32, -scale1, scale1),
        "ws": jax.random.uniform(ks[4], (C, C, 1), jnp.float32, -scale1, scale1),
        "bs": jax.random.uniform(ks[5], (C,), jnp.float32, -scale1, scale1),
    }


def reference_forward(x, params, *, dilation=1):
    """Pure-JAX reference mirroring the PyTorch module structure, with the
    same bf16-operand / f32-accumulate precision choices as the kernel
    (activations rounded to bf16 at the input, norm math in f32)."""
    N, C, L = x.shape
    d = dilation
    x_bf = x.astype(jnp.bfloat16)

    def mm(w, v):  # (C, K) x (N, K, L) -> (N, C, L)
        return jnp.einsum("ok,nkl->nol", w.astype(jnp.bfloat16),
                          v.astype(jnp.bfloat16),
                          preferred_element_type=jnp.float32)

    def inorm(v):
        m = jnp.mean(v, axis=-1, keepdims=True)
        var = jnp.mean((v - m) ** 2, axis=-1, keepdims=True)
        return (v - m) * jax.lax.rsqrt(var + IN_EPS)

    h = _leaky(x_bf)
    hp = jnp.pad(h, ((0, 0), (0, 0), (d, d)), mode="reflect")
    conv1 = sum(
        mm(params["w1"][:, :, k], hp[:, :, k * d:k * d + L]) for k in range(3)
    ) + params["b1"][None, :, None]
    h2 = _leaky(inorm(conv1))
    conv2 = mm(params["w2"][:, :, 0], h2) + params["b2"][None, :, None]
    blk = inorm(conv2)
    sc = mm(params["ws"][:, :, 0], x_bf) + params["bs"][None, :, None]
    return blk + sc


if __name__ == "__main__":
    N, C, L = 2, 8, 128
    dilation = 1

    key = jax.random.PRNGKey(0)
    kx, kp = jax.random.split(key)
    x = jax.random.normal(kx, (N, C, L), jnp.float32)
    params = init_params(kp, C)

    out = transform_resnet_block(x, params, dilation=dilation)
    out = jax.block_until_ready(out)

    ref = reference_forward(x, params, dilation=dilation)
    np.testing.assert_allclose(np.asarray(out), np.asarray(ref),
                               rtol=2e-3, atol=2e-3)

    print("KERNEL_OK")
</pallas_src>

<mosaic_0001>
module attributes {stable_mosaic.version = 11 : i64} {
  func.func @_resblock_kernel(%arg0: i32, %arg1: memref<2x8x130xbf16, #tpu.memory_space<vmem>>, %arg2: memref<3x8x8xbf16, #tpu.memory_space<vmem>>, %arg3: memref<8x8xbf16, #tpu.memory_space<vmem>>, %arg4: memref<8x8xbf16, #tpu.memory_space<vmem>>, %arg5: memref<8x1xf32, #tpu.memory_space<vmem>>, %arg6: memref<2x8x128xf32, #tpu.memory_space<vmem>>) attributes {dimension_semantics = [#tpu.dimension_semantics<parallel>], iteration_bounds = array<i64: 1>, scalar_prefetch = 0 : i64, scratch_operands = 0 : i64, tpu.core_type = #tpu.core_type<tc>, window_params = [{transform_indices = @transform_0, window_bounds = array<i64: 2, 8, 130>}, {pipeline_mode = #tpu.pipeline_mode<synchronous>, transform_indices = @transform_1, window_bounds = array<i64: 3, 8, 8>}, {pipeline_mode = #tpu.pipeline_mode<synchronous>, transform_indices = @transform_2, window_bounds = array<i64: 8, 8>}, {pipeline_mode = #tpu.pipeline_mode<synchronous>, transform_indices = @transform_3, window_bounds = array<i64: 8, 8>}, {pipeline_mode = #tpu.pipeline_mode<synchronous>, transform_indices = @transform_4, window_bounds = array<i64: 8, 1>}, {transform_indices = @transform_5, window_bounds = array<i64: 2, 8, 128>}]} {
    %c0 = arith.constant 0 : index
    %c0_0 = arith.constant 0 : index
    %0 = vector.load %arg5[%c0, %c0_0] : memref<8x1xf32, #tpu.memory_space<vmem>>, vector<8x1xf32>
    %c0_1 = arith.constant 0 : index
    %c0_2 = arith.constant 0 : index
    %1 = vector.load %arg3[%c0_1, %c0_2] : memref<8x8xbf16, #tpu.memory_space<vmem>>, vector<8x8xbf16>
    %c0_3 = arith.constant 0 : index
    %c0_4 = arith.constant 0 : index
    %2 = vector.load %arg4[%c0_3, %c0_4] : memref<8x8xbf16, #tpu.memory_space<vmem>>, vector<8x8xbf16>
    %c0_5 = arith.constant 0 : index
    %c0_6 = arith.constant 0 : index
    %c0_7 = arith.constant 0 : index
    %3 = vector.load %arg2[%c0_5, %c0_6, %c0_7] : memref<3x8x8xbf16, #tpu.memory_space<vmem>>, vector<1x8x8xbf16>
    %4 = vector.shape_cast %3 : vector<1x8x8xbf16> to vector<8x8xbf16>
    %c1 = arith.constant 1 : index
    %c0_8 = arith.constant 0 : index
    %c0_9 = arith.constant 0 : index
    %5 = vector.load %arg2[%c1, %c0_8, %c0_9] : memref<3x8x8xbf16, #tpu.memory_space<vmem>>, vector<1x8x8xbf16>
    %6 = vector.shape_cast %5 : vector<1x8x8xbf16> to vector<8x8xbf16>
    %c2 = arith.constant 2 : index
    %c0_10 = arith.constant 0 : index
    %c0_11 = arith.constant 0 : index
    %7 = vector.load %arg2[%c2, %c0_10, %c0_11] : memref<3x8x8xbf16, #tpu.memory_space<vmem>>, vector<1x8x8xbf16>
    %8 = vector.shape_cast %7 : vector<1x8x8xbf16> to vector<8x8xbf16>
    %c0_12 = arith.constant 0 : index
    %c0_13 = arith.constant 0 : index
    %c0_14 = arith.constant 0 : index
    %9 = vector.load %arg1[%c0_12, %c0_13, %c0_14] : memref<2x8x130xbf16, #tpu.memory_space<vmem>>, vector<1x8x130xbf16>
    %10 = vector.shape_cast %9 : vector<1x8x130xbf16> to vector<8x130xbf16>
    %11 = vector.extract_strided_slice %10 {offsets = [0, 1], sizes = [8, 128], strides = [1, 1]} : vector<8x130xbf16> to vector<8x128xbf16>
    %cst = arith.constant 0.000000e+00 : bf16
    %12 = vector.broadcast %cst : bf16 to vector<8x130xbf16>
    %13 = arith.cmpf oge, %10, %12 : vector<8x130xbf16>
    %cst_15 = arith.constant 2.001950e-01 : bf16
    %14 = vector.broadcast %cst_15 : bf16 to vector<8x130xbf16>
    %15 = arith.mulf %14, %10 : vector<8x130xbf16>
    %16 = arith.select %13, %10, %15 : vector<8x130xi1>, vector<8x130xbf16>
    %17 = vector.extract_strided_slice %16 {offsets = [0, 0], sizes = [8, 128], strides = [1, 1]} : vector<8x130xbf16> to vector<8x128xbf16>
    %cst_16 = arith.constant dense<0.000000e+00> : vector<8x128xf32>
    %18 = tpu.matmul %4, %17, %cst_16 {dimension_numbers = #tpu.dot_dimension_numbers<[1], [0], [0], [1], [0, 0, 1, 1], [], []>} : vector<8x8xbf16>, vector<8x128xbf16>, vector<8x128xf32> -> vector<8x128xf32>
    %19 = vector.extract_strided_slice %16 {offsets = [0, 1], sizes = [8, 128], strides = [1, 1]} : vector<8x130xbf16> to vector<8x128xbf16>
    %cst_17 = arith.constant dense<0.000000e+00> : vector<8x128xf32>
    %20 = tpu.matmul %6, %19, %cst_17 {dimension_numbers = #tpu.dot_dimension_numbers<[1], [0], [0], [1], [0, 0, 1, 1], [], []>} : vector<8x8xbf16>, vector<8x128xbf16>, vector<8x128xf32> -> vector<8x128xf32>
    %21 = arith.addf %18, %20 : vector<8x128xf32>
    %22 = vector.extract_strided_slice %16 {offsets = [0, 2], sizes = [8, 128], strides = [1, 1]} : vector<8x130xbf16> to vector<8x128xbf16>
    %cst_18 = arith.constant dense<0.000000e+00> : vector<8x128xf32>
    %23 = tpu.matmul %8, %22, %cst_18 {dimension_numbers = #tpu.dot_dimension_numbers<[1], [0], [0], [1], [0, 0, 1, 1], [], []>} : vector<8x8xbf16>, vector<8x128xbf16>, vector<8x128xf32> -> vector<8x128xf32>
    %24 = arith.addf %21, %23 : vector<8x128xf32>
    %cst_19 = arith.constant dense<0.000000e+00> : vector<8xf32>
    %25 = vector.multi_reduction <add>, %24, %cst_19 [1] : vector<8x128xf32> to vector<8xf32>
    %26 = vector.shape_cast %25 : vector<8xf32> to vector<8x1xf32>
    %27 = arith.mulf %24, %24 : vector<8x128xf32>
    %cst_20 = arith.constant dense<0.000000e+00> : vector<8xf32>
    %28 = vector.multi_reduction <add>, %27, %cst_20 [1] : vector<8x128xf32> to vector<8xf32>
    %29 = vector.shape_cast %28 : vector<8xf32> to vector<8x1xf32>
    %cst_21 = arith.constant 7.812500e-03 : f32
    %30 = vector.broadcast %cst_21 : f32 to vector<8x1xf32>
    %31 = arith.mulf %26, %30 : vector<8x1xf32>
    %cst_22 = arith.constant 7.812500e-03 : f32
    %32 = vector.broadcast %cst_22 : f32 to vector<8x1xf32>
    %33 = arith.mulf %29, %32 : vector<8x1xf32>
    %34 = arith.mulf %31, %31 : vector<8x1xf32>
    %35 = arith.subf %33, %34 : vector<8x1xf32>
    %cst_23 = arith.constant 0.000000e+00 : f32
    %36 = vector.broadcast %cst_23 : f32 to vector<8x1xf32>
    %37 = arith.maximumf %35, %36 : vector<8x1xf32>
    %38 = vector.broadcast %31 : vector<8x1xf32> to vector<8x128xf32>
    %39 = arith.subf %24, %38 : vector<8x128xf32>
    %cst_24 = arith.constant 9.99999974E-6 : f32
    %40 = vector.broadcast %cst_24 : f32 to vector<8x1xf32>
    %41 = arith.addf %37, %40 : vector<8x1xf32>
    %42 = math.rsqrt %41 : vector<8x1xf32>
    %43 = vector.broadcast %42 : vector<8x1xf32> to vector<8x128xf32>
    %44 = arith.mulf %39, %43 : vector<8x128xf32>
    %cst_25 = arith.constant 0.000000e+00 : f32
    %45 = vector.broadcast %cst_25 : f32 to vector<8x128xf32>
    %46 = arith.cmpf oge, %44, %45 : vector<8x128xf32>
    %cst_26 = arith.constant 2.000000e-01 : f32
    %47 = vector.broadcast %cst_26 : f32 to vector<8x128xf32>
    %48 = arith.mulf %47, %44 : vector<8x128xf32>
    %49 = arith.select %46, %44, %48 : vector<8x128xi1>, vector<8x128xf32>
    %50 = arith.truncf %49 : vector<8x128xf32> to vector<8x128xbf16>
    %cst_27 = arith.constant dense<0.000000e+00> : vector<8x128xf32>
    %51 = tpu.matmul %1, %50, %cst_27 {dimension_numbers = #tpu.dot_dimension_numbers<[1], [0], [0], [1], [0, 0, 1, 1], [], []>} : vector<8x8xbf16>, vector<8x128xbf16>, vector<8x128xf32> -> vector<8x128xf32>
    %cst_28 = arith.constant dense<0.000000e+00> : vector<8xf32>
    %52 = vector.multi_reduction <add>, %51, %cst_28 [1] : vector<8x128xf32> to vector<8xf32>
    %53 = vector.shape_cast %52 : vector<8xf32> to vector<8x1xf32>
    %54 = arith.mulf %51, %51 : vector<8x128xf32>
    %cst_29 = arith.constant dense<0.000000e+00> : vector<8xf32>
    %55 = vector.multi_reduction <add>, %54, %cst_29 [1] : vector<8x128xf32> to vector<8xf32>
    %56 = vector.shape_cast %55 : vector<8xf32> to vector<8x1xf32>
    %cst_30 = arith.constant 7.812500e-03 : f32
    %57 = vector.broadcast %cst_30 : f32 to vector<8x1xf32>
    %58 = arith.mulf %53, %57 : vector<8x1xf32>
    %cst_31 = arith.constant 7.812500e-03 : f32
    %59 = vector.broadcast %cst_31 : f32 to vector<8x1xf32>
    %60 = arith.mulf %56, %59 : vector<8x1xf32>
    %61 = arith.mulf %58, %58 : vector<8x1xf32>
    %62 = arith.subf %60, %61 : vector<8x1xf32>
    %cst_32 = arith.constant 0.000000e+00 : f32
    %63 = vector.broadcast %cst_32 : f32 to vector<8x1xf32>
    %64 = arith.maximumf %62, %63 : vector<8x1xf32>
    %65 = vector.broadcast %58 : vector<8x1xf32> to vector<8x128xf32>
    %66 = arith.subf %51, %65 : vector<8x128xf32>
    %cst_33 = arith.constant 9.99999974E-6 : f32
    %67 = vector.broadcast %cst_33 : f32 to vector<8x1xf32>
    %68 = arith.addf %64, %67 : vector<8x1xf32>
    %69 = math.rsqrt %68 : vector<8x1xf32>
    %70 = vector.broadcast %69 : vector<8x1xf32> to vector<8x128xf32>
    %71 = arith.mulf %66, %70 : vector<8x128xf32>
    %cst_34 = arith.constant dense<0.000000e+00> : vector<8x128xf32>
    %72 = tpu.matmul %2, %11, %cst_34 {dimension_numbers = #tpu.dot_dimension_numbers<[1], [0], [0], [1], [0, 0, 1, 1], [], []>} : vector<8x8xbf16>, vector<8x128xbf16>, vector<8x128xf32> -> vector<8x128xf32>
    %73 = vector.broadcast %0 : vector<8x1xf32> to vector<8x128xf32>
    %74 = arith.addf %72, %73 : vector<8x128xf32>
    %75 = arith.addf %71, %74 : vector<8x128xf32>
    %c0_35 = arith.constant 0 : index
    %c0_36 = arith.constant 0 : index
    %c0_37 = arith.constant 0 : index
    %76 = vector.load %arg6[%c0_35, %c0_36, %c0_37] : memref<2x8x128xf32, #tpu.memory_space<vmem>>, vector<1x8x128xf32>
    %77 = vector.shape_cast %76 : vector<1x8x128xf32> to vector<8x128xf32>
    %78 = vector.shape_cast %75 : vector<8x128xf32> to vector<1x8x128xf32>
    tpu.vector_store %arg6[%c0_35, %c0_36, %c0_37], %78 {strides = array<i32>} : memref<2x8x128xf32, #tpu.memory_space<vmem>>, vector<1x8x128xf32>,
    %c1_38 = arith.constant 1 : index
    %c0_39 = arith.constant 0 : index
    %c0_40 = arith.constant 0 : index
    %79 = vector.load %arg1[%c1_38, %c0_39, %c0_40] : memref<2x8x130xbf16, #tpu.memory_space<vmem>>, vector<1x8x130xbf16>
    %80 = vector.shape_cast %79 : vector<1x8x130xbf16> to vector<8x130xbf16>
    %81 = vector.extract_strided_slice %80 {offsets = [0, 1], sizes = [8, 128], strides = [1, 1]} : vector<8x130xbf16> to vector<8x128xbf16>
    %cst_41 = arith.constant 0.000000e+00 : bf16
    %82 = vector.broadcast %cst_41 : bf16 to vector<8x130xbf16>
    %83 = arith.cmpf oge, %80, %82 : vector<8x130xbf16>
    %cst_42 = arith.constant 2.001950e-01 : bf16
    %84 = vector.broadcast %cst_42 : bf16 to vector<8x130xbf16>
    %85 = arith.mulf %84, %80 : vector<8x130xbf16>
    %86 = arith.select %83, %80, %85 : vector<8x130xi1>, vector<8x130xbf16>
    %87 = vector.extract_strided_slice %86 {offsets = [0, 0], sizes = [8, 128], strides = [1, 1]} : vector<8x130xbf16> to vector<8x128xbf16>
    %cst_43 = arith.constant dense<0.000000e+00> : vector<8x128xf32>
    %88 = tpu.matmul %4, %87, %cst_43 {dimension_numbers = #tpu.dot_dimension_numbers<[1], [0], [0], [1], [0, 0, 1, 1], [], []>} : vector<8x8xbf16>, vector<8x128xbf16>, vector<8x128xf32> -> vector<8x128xf32>
    %89 = vector.extract_strided_slice %86 {offsets = [0, 1], sizes = [8, 128], strides = [1, 1]} : vector<8x130xbf16> to vector<8x128xbf16>
    %cst_44 = arith.constant dense<0.000000e+00> : vector<8x128xf32>
    %90 = tpu.matmul %6, %89, %cst_44 {dimension_numbers = #tpu.dot_dimension_numbers<[1], [0], [0], [1], [0, 0, 1, 1], [], []>} : vector<8x8xbf16>, vector<8x128xbf16>, vector<8x128xf32> -> vector<8x128xf32>
    %91 = arith.addf %88, %90 : vector<8x128xf32>
    %92 = vector.extract_strided_slice %86 {offsets = [0, 2], sizes = [8, 128], strides = [1, 1]} : vector<8x130xbf16> to vector<8x128xbf16>
    %cst_45 = arith.constant dense<0.000000e+00> : vector<8x128xf32>
    %93 = tpu.matmul %8, %92, %cst_45 {dimension_numbers = #tpu.dot_dimension_numbers<[1], [0], [0], [1], [0, 0, 1, 1], [], []>} : vector<8x8xbf16>, vector<8x128xbf16>, vector<8x128xf32> -> vector<8x128xf32>
    %94 = arith.addf %91, %93 : vector<8x128xf32>
    %cst_46 = arith.constant dense<0.000000e+00> : vector<8xf32>
    %95 = vector.multi_reduction <add>, %94, %cst_46 [1] : vector<8x128xf32> to vector<8xf32>
    %96 = vector.shape_cast %95 : vector<8xf32> to vector<8x1xf32>
    %97 = arith.mulf %94, %94 : vector<8x128xf32>
    %cst_47 = arith.constant dense<0.000000e+00> : vector<8xf32>
    %98 = vector.multi_reduction <add>, %97, %cst_47 [1] : vector<8x128xf32> to vector<8xf32>
    %99 = vector.shape_cast %98 : vector<8xf32> to vector<8x1xf32>
    %cst_48 = arith.constant 7.812500e-03 : f32
    %100 = vector.broadcast %cst_48 : f32 to vector<8x1xf32>
    %101 = arith.mulf %96, %100 : vector<8x1xf32>
    %cst_49 = arith.constant 7.812500e-03 : f32
    %102 = vector.broadcast %cst_49 : f32 to vector<8x1xf32>
    %103 = arith.mulf %99, %102 : vector<8x1xf32>
    %104 = arith.mulf %101, %101 : vector<8x1xf32>
    %105 = arith.subf %103, %104 : vector<8x1xf32>
    %cst_50 = arith.constant 0.000000e+00 : f32
    %106 = vector.broadcast %cst_50 : f32 to vector<8x1xf32>
    %107 = arith.maximumf %105, %106 : vector<8x1xf32>
    %108 = vector.broadcast %101 : vector<8x1xf32> to vector<8x128xf32>
    %109 = arith.subf %94, %108 : vector<8x128xf32>
    %cst_51 = arith.constant 9.99999974E-6 : f32
    %110 = vector.broadcast %cst_51 : f32 to vector<8x1xf32>
    %111 = arith.addf %107, %110 : vector<8x1xf32>
    %112 = math.rsqrt %111 : vector<8x1xf32>
    %113 = vector.broadcast %112 : vector<8x1xf32> to vector<8x128xf32>
    %114 = arith.mulf %109, %113 : vector<8x128xf32>
    %cst_52 = arith.constant 0.000000e+00 : f32
    %115 = vector.broadcast %cst_52 : f32 to vector<8x128xf32>
    %116 = arith.cmpf oge, %114, %115 : vector<8x128xf32>
    %cst_53 = arith.constant 2.000000e-01 : f32
    %117 = vector.broadcast %cst_53 : f32 to vector<8x128xf32>
    %118 = arith.mulf %117, %114 : vector<8x128xf32>
    %119 = arith.select %116, %114, %118 : vector<8x128xi1>, vector<8x128xf32>
    %120 = arith.truncf %119 : vector<8x128xf32> to vector<8x128xbf16>
    %cst_54 = arith.constant dense<0.000000e+00> : vector<8x128xf32>
    %121 = tpu.matmul %1, %120, %cst_54 {dimension_numbers = #tpu.dot_dimension_numbers<[1], [0], [0], [1], [0, 0, 1, 1], [], []>} : vector<8x8xbf16>, vector<8x128xbf16>, vector<8x128xf32> -> vector<8x128xf32>
    %cst_55 = arith.constant dense<0.000000e+00> : vector<8xf32>
    %122 = vector.multi_reduction <add>, %121, %cst_55 [1] : vector<8x128xf32> to vector<8xf32>
    %123 = vector.shape_cast %122 : vector<8xf32> to vector<8x1xf32>
    %124 = arith.mulf %121, %121 : vector<8x128xf32>
    %cst_56 = arith.constant dense<0.000000e+00> : vector<8xf32>
    %125 = vector.multi_reduction <add>, %124, %cst_56 [1] : vector<8x128xf32> to vector<8xf32>
    %126 = vector.shape_cast %125 : vector<8xf32> to vector<8x1xf32>
    %cst_57 = arith.constant 7.812500e-03 : f32
    %127 = vector.broadcast %cst_57 : f32 to vector<8x1xf32>
    %128 = arith.mulf %123, %127 : vector<8x1xf32>
    %cst_58 = arith.constant 7.812500e-03 : f32
    %129 = vector.broadcast %cst_58 : f32 to vector<8x1xf32>
    %130 = arith.mulf %126, %129 : vector<8x1xf32>
    %131 = arith.mulf %128, %128 : vector<8x1xf32>
    %132 = arith.subf %130, %131 : vector<8x1xf32>
    %cst_59 = arith.constant 0.000000e+00 : f32
    %133 = vector.broadcast %cst_59 : f32 to vector<8x1xf32>
    %134 = arith.maximumf %132, %133 : vector<8x1xf32>
    %135 = vector.broadcast %128 : vector<8x1xf32> to vector<8x128xf32>
    %136 = arith.subf %121, %135 : vector<8x128xf32>
    %cst_60 = arith.constant 9.99999974E-6 : f32
    %137 = vector.broadcast %cst_60 : f32 to vector<8x1xf32>
    %138 = arith.addf %134, %137 : vector<8x1xf32>
    %139 = math.rsqrt %138 : vector<8x1xf32>
    %140 = vector.broadcast %139 : vector<8x1xf32> to vector<8x128xf32>
    %141 = arith.mulf %136, %140 : vector<8x128xf32>
    %cst_61 = arith.constant dense<0.000000e+00> : vector<8x128xf32>
    %142 = tpu.matmul %2, %81, %cst_61 {dimension_numbers = #tpu.dot_dimension_numbers<[1], [0], [0], [1], [0, 0, 1, 1], [], []>} : vector<8x8xbf16>, vector<8x128xbf16>, vector<8x128xf32> -> vector<8x128xf32>
    %143 = vector.broadcast %0 : vector<8x1xf32> to vector<8x128xf32>
    %144 = arith.addf %142, %143 : vector<8x128xf32>
    %145 = arith.addf %141, %144 : vector<8x128xf32>
    %c1_62 = arith.constant 1 : index
    %c0_63 = arith.constant 0 : index
    %c0_64 = arith.constant 0 : index
    %146 = vector.load %arg6[%c1_62, %c0_63, %c0_64] : memref<2x8x128xf32, #tpu.memory_space<vmem>>, vector<1x8x128xf32>
    %147 = vector.shape_cast %146 : vector<1x8x128xf32> to vector<8x128xf32>
    %148 = vector.shape_cast %145 : vector<8x128xf32> to vector<1x8x128xf32>
    tpu.vector_store %arg6[%c1_62, %c0_63, %c0_64], %148 {strides = array<i32>} : memref<2x8x128xf32, #tpu.memory_space<vmem>>, vector<1x8x128xf32>,
    return
  }
  func.func @transform_0(%arg0: i32) -> (i32, i32, i32) {
    %c0_i32 = arith.constant 0 : i32
    %c0_i32_0 = arith.constant 0 : i32
    %c0_i32_1 = arith.constant 0 : i32
    return %arg0, %c0_i32, %c0_i32_0 : i32, i32, i32
  }
  func.func @transform_1(%arg0: i32) -> (i32, i32, i32) {
    %c0_i32 = arith.constant 0 : i32
    %c0_i32_0 = arith.constant 0 : i32
    %c0_i32_1 = arith.constant 0 : i32
    %c0_i32_2 = arith.constant 0 : i32
    return %c0_i32, %c0_i32_0, %c0_i32_1 : i32, i32, i32
  }
  func.func @transform_2(%arg0: i32) -> (i32, i32) {
    %c0_i32 = arith.constant 0 : i32
    %c0_i32_0 = arith.constant 0 : i32
    %c0_i32_1 = arith.constant 0 : i32
    return %c0_i32, %c0_i32_0 : i32, i32
  }
  func.func @transform_3(%arg0: i32) -> (i32, i32) {
    %c0_i32 = arith.constant 0 : i32
    %c0_i32_0 = arith.constant 0 : i32
    %c0_i32_1 = arith.constant 0 : i32
    return %c0_i32, %c0_i32_0 : i32, i32
  }
  func.func @transform_4(%arg0: i32) -> (i32, i32) {
    %c0_i32 = arith.constant 0 : i32
    %c0_i32_0 = arith.constant 0 : i32
    %c0_i32_1 = arith.constant 0 : i32
    return %c0_i32, %c0_i32_0 : i32, i32
  }
  func.func @transform_5(%arg0: i32) -> (i32, i32, i32) {
    %c0_i32 = arith.constant 0 : i32
    %c0_i32_0 = arith.constant 0 : i32
    %c0_i32_1 = arith.constant 0 : i32
    return %arg0, %c0_i32, %c0_i32_0 : i32, i32, i32
  }
}

</mosaic_0001>

<llo_original>
// kernel: tpu_custom_call.1
$region0: #{tpu_custom_call.1}
  #allocation0 [shape = 'u32[]', space=smem, size = 0x4, offset = 0x4, fixed_abs, tag = 'smem constant byte address 0x4 - core index']
  #allocation1 [shape = 'u32[72,128]{1,0:T(1,128)}', space=vmem, size = 0x9000, scoped, tag = 'internal scratch']
  %s0 = inlined_call_operand.hbm [shape: bf16[2,8,130], index: 0, kind: input, shape index: {}]
  %s1 = inlined_call_operand.hbm [shape: bf16[3,8,8], index: 1, kind: input, shape index: {}]
  %s2 = inlined_call_operand.vmem [shape: bf16[8,8], index: 2, kind: input, shape index: {}]
  %s3 = inlined_call_operand.vmem [shape: bf16[8,8], index: 3, kind: input, shape index: {}]
  %s4 = inlined_call_operand.vmem [shape: f32[8,1], index: 4, kind: input, shape index: {}]
  %s5 = inlined_call_operand.hbm [shape: f32[2,8,128], index: 5, kind: output, shape index: {}]
  %s6 = sld [smem:[#allocation0]]
  $region38: #{tpu_custom_call.1} parent=0
    _
  %s8 = ssub.s32 1, %s6
  %s9 = scalar_select 0, %s8, %s6
  $region1: #{tpu_custom_call.1} parent=0
    #allocation2 [shape = 'u8[8192]{0}', space=vmem, size = 0x2000, scoped, tag = 'input window, operand 0, single buffered']
    #allocation3 [shape = 's32[1]{0}', space=sflag, size = 0x4, scoped, tag = 'scoped memory for tpu_custom_call.1']
    #allocation4 [shape = 's32[1]{0}', space=sflag, size = 0x4, scoped, tag = 'scoped memory for tpu_custom_call.1']
    #allocation5 [shape = 'u8[6144]{0}', space=vmem, size = 0x1800, scoped, tag = 'input window, operand 1, single buffered']
    #allocation6 [shape = 's32[1]{0}', space=sflag, size = 0x4, scoped, tag = 'scoped memory for tpu_custom_call.1']
    #allocation7 [shape = 'u8[8192]{0}', space=vmem, size = 0x2000, scoped, tag = 'output window, operand 0, single buffered']
    %10 = vsyncpa [#allocation3], 0
    %11 = vsyncpa [#allocation6], 0
    %12 = vsyncpa [#allocation4], 0
    // Predicated region
    $region2: #{tpu_custom_call.1} parent=1 // pred_check
      _
    $region3: #{tpu_custom_call.1} parent=1 // pred_check_branch
      %14 = sbr.rel (0) target = $region5
    $region4: #{tpu_custom_call.1} parent=1 // pred_region
      %16 = vsyncadd [#allocation3], 0
      %s17 = sshll.u32 %s0, 4
      %s18 = int_to_ptr.hbm [resolvable:$true] %s17
      %s19 = sshll.u32 [#allocation2], 4
      %s20 = int_to_ptr.vmem [resolvable:$true] %s19
      %25 = dma.hbm_to_vmem [thread:$0]  %s18, 256, %s20, [#allocation3], 128, 128, 8
    $region5: #{tpu_custom_call.1} parent=1 // pred_fallthru
      _
    // Predicated region
    $region6: #{tpu_custom_call.1} parent=1 // pred_check
      _
    $region7: #{tpu_custom_call.1} parent=1 // pred_check_branch
      %27 = sbr.rel (0) target = $region9
    $region8: #{tpu_custom_call.1} parent=1 // pred_region
      %29 = vsyncadd [#allocation6], 0
      %s30 = sshll.u32 %s1, 4
      %s31 = int_to_ptr.hbm [resolvable:$true] %s30
      %s32 = sshll.u32 [#allocation5], 4
      %s33 = int_to_ptr.vmem [resolvable:$true] %s32
      %38 = dma.hbm_to_vmem [thread:$0]  %s31, 192, %s33, [#allocation6], 64, 64, 4
    $region9: #{tpu_custom_call.1} parent=1 // pred_fallthru
      _
    // Predicated region
    $region10: #{tpu_custom_call.1} parent=1 // pred_check
      _
    $region11: #{tpu_custom_call.1} parent=1 // pred_check_branch
      %40 = sbr.rel (0) target = $region13
    $region12: #{tpu_custom_call.1} parent=1 // pred_region
      _
    $region13: #{tpu_custom_call.1} parent=1 // pred_fallthru
      _
    // Predicated region
    $region14: #{tpu_custom_call.1} parent=1 // pred_check
      _
    $region15: #{tpu_custom_call.1} parent=1 // pred_check_branch
      %42 = sbr.rel (0) target = $region17
    $region16: #{tpu_custom_call.1} parent=1 // pred_region
      _
    $region17: #{tpu_custom_call.1} parent=1 // pred_fallthru
      _
    // Predicated region
    $region18: #{tpu_custom_call.1} parent=1 // pred_check
      _
    $region19: #{tpu_custom_call.1} parent=1 // pred_check_branch
      %44 = sbr.rel (0) target = $region21
    $region20: #{tpu_custom_call.1} parent=1 // pred_region
      _
    $region21: #{tpu_custom_call.1} parent=1 // pred_fallthru
      _
    // Predicated region
    $region22: #{tpu_custom_call.1} parent=1 // pred_check
      _
    $region23: #{tpu_custom_call.1} parent=1 // pred_check_branch
      %46 = sbr.rel (0) target = $region25
    $region24: #{tpu_custom_call.1} parent=1 // pred_region
      %48 = dma.done [#allocation3], 256
    $region25: #{tpu_custom_call.1} parent=1 // pred_fallthru
      _
    // Predicated region
    $region26: #{tpu_custom_call.1} parent=1 // pred_check
      _
    $region27: #{tpu_custom_call.1} parent=1 // pred_check_branch
      %50 = sbr.rel (0) target = $region29
    $region28: #{tpu_custom_call.1} parent=1 // pred_region
      %52 = dma.done [#allocation6], 192
    $region29: #{tpu_custom_call.1} parent=1 // pred_fallthru
      _
    %v54 = vld [vmem:[%s4] sm:$0xff]
    %v55 = vld [vmem:[%s2] sm:$0xf]
    %v56 = vld [vmem:[%s3] sm:$0xf]
    %v57 = vld [vmem:[#allocation5] sm:$0xf]
    %s58 = scalar_lea.vmem [#allocation5], 4
    %v59 = vld [vmem:[%s58] sm:$0xf]
    %s60 = scalar_lea.vmem [#allocation5], 8
    %v61 = vld [vmem:[%s60] sm:$0xf]
    %v62 = vld [vmem:[#allocation2] sm:$0xff]
    %v63 = vunpack.c.l.bf16 %v62
    %v64 = vunpack.c.h.bf16 %v62
    %vm65 = vcmp.ge.f32.partialorder %v63, 0.0
    %vm66 = vcmp.ge.f32.partialorder %v64, 0.0
    %v67 = vmul.f32 %v63, 0.20019531
    %v68 = vmul.f32 %v64, 0.20019531
    %v69 = vpack.c.bf16 %v68, %v67
    %vm70 = vmpackc.low %vm66, %vm65
    %v71 = vsel %vm70, %v62, %v69
    %v73 = vunpack.c.l.b16 %v71
    %v74 = vunpack.c.h.b16 %v71
    %v75 = vpack.c.b16 %v73, %v73
    %v76 = vpack.c.b16 %v74, %v74
    %77 = vrot.lane.b32.xlu0 %v75, 127
    %v78 = vpop.permute.xlu0 %77
    %79 = vrot.lane.b32.xlu0 %v76, 127
    %v80 = vpop.permute.xlu0 %79
    %vm81 = vcmask 1039360
    %v82 = vsel %vm81, %v78, %v80
    %vm83 = vcmask 64512
    %v85 = vsel %vm83, %v59, 0
    %vm87 = vcmask 1043456
    %v89 = vsel %vm87, %v82, 0
    %91 = vmatpush.bf16.msra.mxu0 0
    %92 = vmatpush.bf16.msra.mxu0 0
    %93 = vmatpush.bf16.msra.mxu0 0
    %94 = vmatpush.bf16.msra.mxu0 0
    %95 = vmatpush.bf16.msra.mxu0 0
    %96 = vmatpush.bf16.msra.mxu0 0
    %97 = vmatpush.bf16.msra.mxu0 0
    %98 = vmatpush.bf16.msra.mxu0 %v89
    %99 = vmatmul.bf16.gmra.mxu0 %v85
    %v100 = vpop.f32.mrf.mxu0
    %v101 = vadd.f32 0.0, %v100
    %v102 = vpop.f32.mrf.mxu0
    %103 = vdwg.mxu0
    %v105 = vsel %vm83, %v57, 0
    %v108 = vsel %vm87, %v71, 0
    %110 = vmatpush.bf16.msra.mxu0 0
    %111 = vmatpush.bf16.msra.mxu0 0
    %112 = vmatpush.bf16.msra.mxu0 0
    %113 = vmatpush.bf16.msra.mxu0 0
    %114 = vmatpush.bf16.msra.mxu0 0
    %115 = vmatpush.bf16.msra.mxu0 0
    %116 = vmatpush.bf16.msra.mxu0 0
    %117 = vmatpush.bf16.msra.mxu0 %v108
    %118 = vmatmul.bf16.gmra.mxu0 %v105
    %v119 = vpop.f32.mrf.mxu0
    %v120 = vadd.f32 %v101, %v119
    %v121 = vpop.f32.mrf.mxu0
    %122 = vdwg.mxu0
    %123 = vrot.lane.b32.xlu0 %v75, 126
    %v124 = vpop.permute.xlu0 %123
    %125 = vrot.lane.b32.xlu0 %v76, 126
    %v126 = vpop.permute.xlu0 %125
    %vm127 = vcmask 1031168
    %v128 = vsel %vm127, %v124, %v126
    %v130 = vsel %vm83, %v61, 0
    %v133 = vsel %vm87, %v128, 0
    %135 = vmatpush.bf16.msra.mxu0 0
    %136 = vmatpush.bf16.msra.mxu0 0
    %137 = vmatpush.bf16.msra.mxu0 0
    %138 = vmatpush.bf16.msra.mxu0 0
    %139 = vmatpush.bf16.msra.mxu0 0
    %140 = vmatpush.bf16.msra.mxu0 0
    %141 = vmatpush.bf16.msra.mxu0 0
    %142 = vmatpush.bf16.msra.mxu0 %v133
    %143 = vmatmul.bf16.gmra.mxu0 %v130
    %v144 = vpop.f32.mrf.mxu0
    %v145 = vadd.f32 0.0, %v144
    %v146 = vpop.f32.mrf.mxu0
    %147 = vdwg.mxu0
    %v148 = vadd.f32 %v120, %v145
    %149 = vadd.xlane.f32.xlu0 %v148
    %v150 = vpop.xlane.xlu0 %149
    %v151 = vmul.f32 %v148, %v148
    %152 = vadd.xlane.f32.xlu0 %v151
    %v153 = vpop.xlane.xlu0 %152
    %v154 = vmul.f32 %v150, 0.0078125
    %v155 = vmul.f32 %v153, 0.0078125
    %v156 = vmul.f32 %v154, %v154
    %v157 = vsub.f32 %v155, %v156
    %v158 = vmax.f32 %v157, 0.0
    %v159 = vsub.f32 %v148, %v154
    %v160 = vadd.f32 %v158, 1e-05
    %v161 = vrsqrt.pop %v160
    %v162 = vmul.f32 %v161, %v160
    %v163 = vmul.f32 %v162, %v161
    %v164 = vmul.f32 0.5, %v163
    %v165 = vsub.f32 1.5, %v164
    %v166 = vmul.f32 %v161, %v165
    %vm167 = vweird.f32 %v160
    %vm168 = vweird.f32 %v161
    %vm169 = vmor %vm167, %vm168
    %v170 = vsel %vm169, %v161, %v166
    %v171 = vmul.f32 %v159, %v170
    %vm172 = vcmp.ge.f32.partialorder %v171, 0.0
    %v173 = vmul.f32 %v171, 0.2
    %v174 = vsel %vm172, %v171, %v173
    %v175 = vpack.c.bf16 %v174, %v174
    %v177 = vsel %vm83, %v55, 0
    %v180 = vsel %vm87, %v175, 0
    %182 = vmatpush.bf16.msra.mxu0 0
    %183 = vmatpush.bf16.msra.mxu0 0
    %184 = vmatpush.bf16.msra.mxu0 0
    %185 = vmatpush.bf16.msra.mxu0 0
    %186 = vmatpush.bf16.msra.mxu0 0
    %187 = vmatpush.bf16.msra.mxu0 0
    %188 = vmatpush.bf16.msra.mxu0 0
    %189 = vmatpush.bf16.msra.mxu0 %v180
    %190 = vmatmul.bf16.gmra.mxu0 %v177
    %v191 = vpop.f32.mrf.mxu0
    %v192 = vadd.f32 0.0, %v191
    %v193 = vpop.f32.mrf.mxu0
    %194 = vdwg.mxu0
    %195 = vadd.xlane.f32.xlu0 %v192
    %v196 = vpop.xlane.xlu0 %195
    %v197 = vmul.f32 %v192, %v192
    %198 = vadd.xlane.f32.xlu0 %v197
    %v199 = vpop.xlane.xlu0 %198
    %v200 = vmul.f32 %v196, 0.0078125
    %v201 = vmul.f32 %v199, 0.0078125
    %v202 = vmul.f32 %v200, %v200
    %v203 = vsub.f32 %v201, %v202
    %v204 = vmax.f32 %v203, 0.0
    %v205 = vsub.f32 %v192, %v200
    %v206 = vadd.f32 %v204, 1e-05
    %v207 = vrsqrt.pop %v206
    %v208 = vmul.f32 %v207, %v206
    %v209 = vmul.f32 %v208, %v207
    %v210 = vmul.f32 0.5, %v209
    %v211 = vsub.f32 1.5, %v210
    %v212 = vmul.f32 %v207, %v211
    %vm213 = vweird.f32 %v206
    %vm214 = vweird.f32 %v207
    %vm215 = vmor %vm213, %vm214
    %v216 = vsel %vm215, %v207, %v212
    %v217 = vmul.f32 %v205, %v216
    %219 = vset.pattern.permute.xlu0 0
    %220 = vperm.xlu0 %219, %v54
    %v221 = vpop.permute.xlu0 %220
    %v224 = vunpack.c.l.b16 %v62
    %v225 = vunpack.c.h.b16 %v62
    %v226 = vpack.c.b16 %v224, %v224
    %v227 = vpack.c.b16 %v225, %v225
    %228 = vrot.lane.b32.xlu0 %v226, 127
    %v229 = vpop.permute.xlu0 %228
    %230 = vrot.lane.b32.xlu0 %v227, 127
    %v231 = vpop.permute.xlu0 %230
    %v232 = vsel %vm81, %v229, %v231
    %v234 = vsel %vm83, %v56, 0
    %v237 = vsel %vm87, %v232, 0
    %239 = vmatpush.bf16.msra.mxu0 0
    %240 = vmatpush.bf16.msra.mxu0 0
    %241 = vmatpush.bf16.msra.mxu0 0
    %242 = vmatpush.bf16.msra.mxu0 0
    %243 = vmatpush.bf16.msra.mxu0 0
    %244 = vmatpush.bf16.msra.mxu0 0
    %245 = vmatpush.bf16.msra.mxu0 0
    %246 = vmatpush.bf16.msra.mxu0 %v237
    %247 = vmatmul.bf16.gmra.mxu0 %v234
    %v248 = vpop.f32.mrf.mxu0
    %v249 = vadd.f32 %v221, %v248
    %v250 = vpop.f32.mrf.mxu0
    %251 = vdwg.mxu0
    %v252 = vadd.f32 %v217, %v249
    %253 = vst [vmem:[#allocation7] sm:$0xff] %v252
    %s254 = scalar_lea.vmem [#allocation2], 8
    %v255 = vld [vmem:[%s254] sm:$0xff]
    %v256 = vunpack.c.l.bf16 %v255
    %v257 = vunpack.c.h.bf16 %v255
    %vm258 = vcmp.ge.f32.partialorder %v256, 0.0
    %vm259 = vcmp.ge.f32.partialorder %v257, 0.0
    %v260 = vmul.f32 %v256, 0.20019531
    %v261 = vmul.f32 %v257, 0.20019531
    %v262 = vpack.c.bf16 %v261, %v260
    %vm263 = vmpackc.low %vm259, %vm258
    %v264 = vsel %vm263, %v255, %v262
    %v266 = vunpack.c.l.b16 %v264
    %v267 = vunpack.c.h.b16 %v264
    %v268 = vpack.c.b16 %v266, %v266
    %v269 = vpack.c.b16 %v267, %v267
    %270 = vrot.lane.b32.xlu0 %v268, 127
    %v271 = vpop.permute.xlu0 %270
    %272 = vrot.lane.b32.xlu0 %v269, 127
    %v273 = vpop.permute.xlu0 %272
    %v274 = vsel %vm81, %v271, %v273
    %v276 = vsel %vm87, %v274, 0
    %278 = vmatpush.bf16.msra.mxu0 0
    %279 = vmatpush.bf16.msra.mxu0 0
    %280 = vmatpush.bf16.msra.mxu0 0
    %281 = vmatpush.bf16.msra.mxu0 0
    %282 = vmatpush.bf16.msra.mxu0 0
    %283 = vmatpush.bf16.msra.mxu0 0
    %284 = vmatpush.bf16.msra.mxu0 0
    %285 = vmatpush.bf16.msra.mxu0 %v276
    %286 = vmatmul.bf16.gmra.mxu0 %v85
    %v287 = vpop.f32.mrf.mxu0
    %v288 = vadd.f32 0.0, %v287
    %v289 = vpop.f32.mrf.mxu0
    %290 = vdwg.mxu0
    %v292 = vsel %vm87, %v264, 0
    %294 = vmatpush.bf16.msra.mxu0 0
    %295 = vmatpush.bf16.msra.mxu0 0
    %296 = vmatpush.bf16.msra.mxu0 0
    %297 = vmatpush.bf16.msra.mxu0 0
    %298 = vmatpush.bf16.msra.mxu0 0
    %299 = vmatpush.bf16.msra.mxu0 0
    %300 = vmatpush.bf16.msra.mxu0 0
    %301 = vmatpush.bf16.msra.mxu0 %v292
    %302 = vmatmul.bf16.gmra.mxu0 %v105
    %v303 = vpop.f32.mrf.mxu0
    %v304 = vadd.f32 %v288, %v303
    %v305 = vpop.f32.mrf.mxu0
    %306 = vdwg.mxu0
    %307 = vrot.lane.b32.xlu0 %v268, 126
    %v308 = vpop.permute.xlu0 %307
    %309 = vrot.lane.b32.xlu0 %v269, 126
    %v310 = vpop.permute.xlu0 %309
    %v311 = vsel %vm127, %v308, %v310
    %v313 = vsel %vm87, %v311, 0
    %315 = vmatpush.bf16.msra.mxu0 0
    %316 = vmatpush.bf16.msra.mxu0 0
    %317 = vmatpush.bf16.msra.mxu0 0
    %318 = vmatpush.bf16.msra.mxu0 0
    %319 = vmatpush.bf16.msra.mxu0 0
    %320 = vmatpush.bf16.msra.mxu0 0
    %321 = vmatpush.bf16.msra.mxu0 0
    %322 = vmatpush.bf16.msra.mxu0 %v313
    %323 = vmatmul.bf16.gmra.mxu0 %v130
    %v324 = vpop.f32.mrf.mxu0
    %v325 = vadd.f32 0.0, %v324
    %v326 = vpop.f32.mrf.mxu0
    %327 = vdwg.mxu0
    %v328 = vadd.f32 %v304, %v325
    %329 = vadd.xlane.f32.xlu0 %v328
    %v330 = vpop.xlane.xlu0 %329
    %v331 = vmul.f32 %v328, %v328
    %332 = vadd.xlane.f32.xlu0 %v331
    %v333 = vpop.xlane.xlu0 %332
    %v334 = vmul.f32 %v330, 0.0078125
    %v335 = vmul.f32 %v333, 0.0078125
    %v336 = vmul.f32 %v334, %v334
    %v337 = vsub.f32 %v335, %v336
    %v338 = vmax.f32 %v337, 0.0
    %v339 = vsub.f32 %v328, %v334
    %v340 = vadd.f32 %v338, 1e-05
    %v341 = vrsqrt.pop %v340
    %v342 = vmul.f32 %v341, %v340
    %v343 = vmul.f32 %v342, %v341
    %v344 = vmul.f32 0.5, %v343
    %v345 = vsub.f32 1.5, %v344
    %v346 = vmul.f32 %v341, %v345
    %vm347 = vweird.f32 %v340
    %vm348 = vweird.f32 %v341
    %vm349 = vmor %vm347, %vm348
    %v350 = vsel %vm349, %v341, %v346
    %v351 = vmul.f32 %v339, %v350
    %vm352 = vcmp.ge.f32.partialorder %v351, 0.0
    %v353 = vmul.f32 %v351, 0.2
    %v354 = vsel %vm352, %v351, %v353
    %v355 = vpack.c.bf16 %v354, %v354
    %v357 = vsel %vm87, %v355, 0
    %359 = vmatpush.bf16.msra.mxu0 0
    %360 = vmatpush.bf16.msra.mxu0 0
    %361 = vmatpush.bf16.msra.mxu0 0
    %362 = vmatpush.bf16.msra.mxu0 0
    %363 = vmatpush.bf16.msra.mxu0 0
    %364 = vmatpush.bf16.msra.mxu0 0
    %365 = vmatpush.bf16.msra.mxu0 0
    %366 = vmatpush.bf16.msra.mxu0 %v357
    %367 = vmatmul.bf16.gmra.mxu0 %v177
    %v368 = vpop.f32.mrf.mxu0
    %v369 = vadd.f32 0.0, %v368
    %v370 = vpop.f32.mrf.mxu0
    %371 = vdwg.mxu0
    %372 = vadd.xlane.f32.xlu0 %v369
    %v373 = vpop.xlane.xlu0 %372
    %v374 = vmul.f32 %v369, %v369
    %375 = vadd.xlane.f32.xlu0 %v374
    %v376 = vpop.xlane.xlu0 %375
    %v377 = vmul.f32 %v373, 0.0078125
    %v378 = vmul.f32 %v376, 0.0078125
    %v379 = vmul.f32 %v377, %v377
    %v380 = vsub.f32 %v378, %v379
    %v381 = vmax.f32 %v380, 0.0
    %v382 = vsub.f32 %v369, %v377
    %v383 = vadd.f32 %v381, 1e-05
    %v384 = vrsqrt.pop %v383
    %v385 = vmul.f32 %v384, %v383
    %v386 = vmul.f32 %v385, %v384
    %v387 = vmul.f32 0.5, %v386
    %v388 = vsub.f32 1.5, %v387
    %v389 = vmul.f32 %v384, %v388
    %vm390 = vweird.f32 %v383
    %vm391 = vweird.f32 %v384
    %vm392 = vmor %vm390, %vm391
    %v393 = vsel %vm392, %v384, %v389
    %v394 = vmul.f32 %v382, %v393
    %v396 = vunpack.c.l.b16 %v255
    %v397 = vunpack.c.h.b16 %v255
    %v398 = vpack.c.b16 %v396, %v396
    %v399 = vpack.c.b16 %v397, %v397
    %400 = vrot.lane.b32.xlu0 %v398, 127
    %v401 = vpop.permute.xlu0 %400
    %402 = vrot.lane.b32.xlu0 %v399, 127
    %v403 = vpop.permute.xlu0 %402
    %v404 = vsel %vm81, %v401, %v403
    %v406 = vsel %vm87, %v404, 0
    %408 = vmatpush.bf16.msra.mxu0 0
    %409 = vmatpush.bf16.msra.mxu0 0
    %410 = vmatpush.bf16.msra.mxu0 0
    %411 = vmatpush.bf16.msra.mxu0 0
    %412 = vmatpush.bf16.msra.mxu0 0
    %413 = vmatpush.bf16.msra.mxu0 0
    %414 = vmatpush.bf16.msra.mxu0 0
    %415 = vmatpush.bf16.msra.mxu0 %v406
    %416 = vmatmul.bf16.gmra.mxu0 %v234
    %v417 = vpop.f32.mrf.mxu0
    %v418 = vadd.f32 %v221, %v417
    %v419 = vpop.f32.mrf.mxu0
    %420 = vdwg.mxu0
    %v421 = vadd.f32 %v394, %v418
    %s422 = scalar_lea.vmem [#allocation7], 8
    %423 = vst [vmem:[%s422] sm:$0xff] %v421
    // Predicated region
    $region30: #{tpu_custom_call.1} parent=1 // pred_check
      _
    $region31: #{tpu_custom_call.1} parent=1 // pred_check_branch
      %425 = sbr.rel (0) target = $region33
    $region32: #{tpu_custom_call.1} parent=1 // pred_region
      %427 = vsyncadd [#allocation4], 0
      %s428 = sshll.u32 [#allocation7], 4
      %s429 = int_to_ptr.vmem [resolvable:$true] %s428
      %s430 = sshll.u32 %s5, 4
      %s431 = int_to_ptr.hbm [resolvable:$true] %s430
      %436 = dma.vmem_to_hbm [thread:$0]  %s429, 256, %s431, [#allocation4], 128, 128, 8
    $region33: #{tpu_custom_call.1} parent=1 // pred_fallthru
      _
    // Predicated region
    $region34: #{tpu_custom_call.1} parent=1 // pred_check
      _
    $region35: #{tpu_custom_call.1} parent=1 // pred_check_branch
      %438 = sbr.rel (0) target = $region37
    $region36: #{tpu_custom_call.1} parent=1 // pred_region
      %440 = dma.done [#allocation4], 256
    $region37: #{tpu_custom_call.1} parent=1 // pred_fallthru
      _
    %441 = vsyncpa [#allocation3], 1
    %442 = vsyncpa [#allocation6], 1
    %443 = vsyncpa [#allocation4], 1

</llo_original>
